<compile_context>
chip_gen: v7x
topology: tpu7x:2x2x1
jax: 0.10.0
libtpu: 0.0.40
codegen_flags: <defaults>
</compile_context>

<pallas_src>
import functools

import jax
import jax.numpy as jnp
from jax.experimental import pallas as pl
from jax.experimental.pallas import tpu as pltpu


def _round_up(x, m):
    return ((x + m - 1) // m) * m


def _btl_kernel(u_ref, i_ref, j_ref, o_ref):
    # u_ref/i_ref/j_ref: (d, TB) tiles in VMEM (d on sublanes, batch on lanes).
    # o_ref: (1, TB) lane-dense output tile.
    u = u_ref[...].astype(jnp.float32)
    i = i_ref[...].astype(jnp.float32)
    j = j_ref[...].astype(jnp.float32)
    prod = u * (i - j)                                # VPU elementwise
    diff = jnp.sum(prod, axis=0, keepdims=True)       # XLU sublane reduction -> (1, TB)
    o_ref[...] = jax.nn.sigmoid(diff)                 # EUP exp path


@functools.partial(jax.jit, static_argnames=("block_b",))
def matrix_factorization_forward(U, V, u, i, j, block_b=1024):
    """BTL preference probability: sigmoid(<U[u], V[i] - V[j]>)."""
    B = u.shape[0]
    d = U.shape[1]

    # Batch tile: multiple of 128 lanes, but never larger than the padded batch.
    # Per-step VMEM: 3 inputs x 2 buffers x (d * tb * 4B)  (~0.75 MiB at tb=1024, d=32),
    # comfortably under every generation's scoped-VMEM default.
    tb = min(block_b, _round_up(B, 128))
    Bp = _round_up(B, tb)

    # Pad the cheap (B,) index arrays, not the gathered embedding slabs.
    if Bp != B:
        pad = (0, Bp - B)
        u = jnp.pad(u, pad)
        i = jnp.pad(i, pad)
        j = jnp.pad(j, pad)

    # Gather directly into the lane-dense (d, Bp) layout (d on sublanes, batch on lanes).
    u_t = jnp.take(U.T, u, axis=1)
    i_t = jnp.take(V.T, i, axis=1)
    j_t = jnp.take(V.T, j, axis=1)

    out = pl.pallas_call(
        _btl_kernel,
        out_shape=jax.ShapeDtypeStruct((1, Bp), jnp.float32),
        grid=(Bp // tb,),
        in_specs=[
            pl.BlockSpec((d, tb), lambda b: (0, b)),
            pl.BlockSpec((d, tb), lambda b: (0, b)),
            pl.BlockSpec((d, tb), lambda b: (0, b)),
        ],
        out_specs=pl.BlockSpec((1, tb), lambda b: (0, b)),
        compiler_params=pltpu.CompilerParams(
            dimension_semantics=("parallel",)
        ),
    )(u_t, i_t, j_t)

    # Padded tail rows (index 0 placeholders) are sliced off here.
    return out[0, :B]


if __name__ == "__main__":
    # Deterministic synthetic parameters (matches nn.Parameter(randn(n,d)/sqrt(d))).
    n_users, n_items, d = 10, 20, 32
    batch = 8

    key = jax.random.PRNGKey(0)
    k_u, k_v, k_bu, k_bi, k_bj = jax.random.split(key, 5)

    U = jax.random.normal(k_u, (n_users, d), dtype=jnp.float32) / jnp.sqrt(
        jnp.float32(d)
    )
    V = jax.random.normal(k_v, (n_items, d), dtype=jnp.float32) / jnp.sqrt(
        jnp.float32(d)
    )

    u_idx = jax.random.randint(k_bu, (batch,), 0, n_users)
    i_idx = jax.random.randint(k_bi, (batch,), 0, n_items)
    j_idx = jax.random.randint(k_bj, (batch,), 0, n_items)

    out = matrix_factorization_forward(U, V, u_idx, i_idx, j_idx)
    out = jax.block_until_ready(out)

    ref = jax.nn.sigmoid(jnp.sum(U[u_idx] * (V[i_idx] - V[j_idx]), axis=1))
    assert out.shape == (batch,)
    assert jnp.allclose(out, ref, atol=1e-5, rtol=1e-5)

    # Second check: non-tile-aligned batch exercising the padded tail + larger tiles.
    batch2 = 300
    k2u, k2i, k2j = jax.random.split(jax.random.PRNGKey(1), 3)
    u2 = jax.random.randint(k2u, (batch2,), 0, n_users)
    i2 = jax.random.randint(k2i, (batch2,), 0, n_items)
    j2 = jax.random.randint(k2j, (batch2,), 0, n_items)
    out2 = jax.block_until_ready(matrix_factorization_forward(U, V, u2, i2, j2))
    ref2 = jax.nn.sigmoid(jnp.sum(U[u2] * (V[i2] - V[j2]), axis=1))
    assert out2.shape == (batch2,)
    assert jnp.allclose(out2, ref2, atol=1e-5, rtol=1e-5)

    print("KERNEL_OK")
</pallas_src>

<mosaic_0001>
module attributes {stable_mosaic.version = 11 : i64} {
  func.func @_btl_kernel(%arg0: i32, %arg1: memref<32x128xf32, #tpu.memory_space<vmem>>, %arg2: memref<32x128xf32, #tpu.memory_space<vmem>>, %arg3: memref<32x128xf32, #tpu.memory_space<vmem>>, %arg4: memref<1x128xf32, #tpu.memory_space<vmem>>) attributes {dimension_semantics = [#tpu.dimension_semantics<parallel>], iteration_bounds = array<i64: 1>, scalar_prefetch = 0 : i64, scratch_operands = 0 : i64, tpu.core_type = #tpu.core_type<tc>, window_params = [{transform_indices = @transform_0, window_bounds = array<i64: 32, 128>}, {transform_indices = @transform_1, window_bounds = array<i64: 32, 128>}, {transform_indices = @transform_2, window_bounds = array<i64: 32, 128>}, {transform_indices = @transform_3, window_bounds = array<i64: 1, 128>}]} {
    %c0 = arith.constant 0 : index
    %c0_0 = arith.constant 0 : index
    %0 = vector.load %arg1[%c0, %c0_0] : memref<32x128xf32, #tpu.memory_space<vmem>>, vector<32x128xf32>
    %c0_1 = arith.constant 0 : index
    %c0_2 = arith.constant 0 : index
    %1 = vector.load %arg2[%c0_1, %c0_2] : memref<32x128xf32, #tpu.memory_space<vmem>>, vector<32x128xf32>
    %c0_3 = arith.constant 0 : index
    %c0_4 = arith.constant 0 : index
    %2 = vector.load %arg3[%c0_3, %c0_4] : memref<32x128xf32, #tpu.memory_space<vmem>>, vector<32x128xf32>
    %3 = arith.subf %1, %2 : vector<32x128xf32>
    %4 = arith.mulf %0, %3 : vector<32x128xf32>
    %cst = arith.constant dense<0.000000e+00> : vector<128xf32>
    %5 = vector.multi_reduction <add>, %4, %cst [0] : vector<32x128xf32> to vector<128xf32>
    %6 = vector.shape_cast %5 : vector<128xf32> to vector<1x128xf32>
    %7 = arith.negf %6 : vector<1x128xf32>
    %8 = math.exp %7 : vector<1x128xf32>
    %cst_5 = arith.constant 1.000000e+00 : f32
    %9 = vector.broadcast %cst_5 : f32 to vector<1x128xf32>
    %10 = arith.addf %9, %8 : vector<1x128xf32>
    %11 = arith.divf %9, %10 : vector<1x128xf32>
    %c0_6 = arith.constant 0 : index
    %c0_7 = arith.constant 0 : index
    %12 = vector.load %arg4[%c0_6, %c0_7] : memref<1x128xf32, #tpu.memory_space<vmem>>, vector<1x128xf32>
    tpu.vector_store %arg4[%c0_6, %c0_7], %11 {strides = array<i32>} : memref<1x128xf32, #tpu.memory_space<vmem>>, vector<1x128xf32>,
    return
  }
  func.func @transform_0(%arg0: i32) -> (i32, i32) {
    %c0_i32 = arith.constant 0 : i32
    %c0_i32_0 = arith.constant 0 : i32
    return %c0_i32, %arg0 : i32, i32
  }
  func.func @transform_1(%arg0: i32) -> (i32, i32) {
    %c0_i32 = arith.constant 0 : i32
    %c0_i32_0 = arith.constant 0 : i32
    return %c0_i32, %arg0 : i32, i32
  }
  func.func @transform_2(%arg0: i32) -> (i32, i32) {
    %c0_i32 = arith.constant 0 : i32
    %c0_i32_0 = arith.constant 0 : i32
    return %c0_i32, %arg0 : i32, i32
  }
  func.func @transform_3(%arg0: i32) -> (i32, i32) {
    %c0_i32 = arith.constant 0 : i32
    %c0_i32_0 = arith.constant 0 : i32
    return %c0_i32, %arg0 : i32, i32
  }
}

</mosaic_0001>

<llo_original>
// kernel: matrix_factorization_forward.1
$region0: #{matrix_factorization_forward.1}
  #allocation0 [shape = 'u32[]', space=smem, size = 0x4, offset = 0x4, fixed_abs, tag = 'smem constant byte address 0x4 - core index']
  #allocation1 [shape = 'u32[144,128]{1,0:T(1,128)}', space=vmem, size = 0x12000, scoped, tag = 'internal scratch']
  %s0 = inlined_call_operand.vmem [shape: f32[32,128], index: 0, kind: input, shape index: {}]
  %s1 = inlined_call_operand.vmem [shape: f32[32,128], index: 1, kind: input, shape index: {}]
  %s2 = inlined_call_operand.vmem [shape: f32[32,128], index: 2, kind: input, shape index: {}]
  %s3 = inlined_call_operand.vmem [shape: f32[1,128], index: 3, kind: output, shape index: {}]
  %s4 = sld [smem:[#allocation0]]
  $region22: #{matrix_factorization_forward.1} parent=0
    _
  %s6 = ssub.s32 1, %s4
  %s7 = scalar_select 0, %s6, %s4
  // Predicated region
  $region2: #{matrix_factorization_forward.1} parent=0 // pred_check
    _
  $region3: #{matrix_factorization_forward.1} parent=0 // pred_check_branch
    %9 = sbr.rel (0) target = $region5
  $region4: #{matrix_factorization_forward.1} parent=0 // pred_region
    _
  $region5: #{matrix_factorization_forward.1} parent=0 // pred_fallthru
    _
  // Predicated region
  $region6: #{matrix_factorization_forward.1} parent=0 // pred_check
    _
  $region7: #{matrix_factorization_forward.1} parent=0 // pred_check_branch
    %11 = sbr.rel (0) target = $region9
  $region8: #{matrix_factorization_forward.1} parent=0 // pred_region
    _
  $region9: #{matrix_factorization_forward.1} parent=0 // pred_fallthru
    _
  // Predicated region
  $region10: #{matrix_factorization_forward.1} parent=0 // pred_check
    _
  $region11: #{matrix_factorization_forward.1} parent=0 // pred_check_branch
    %13 = sbr.rel (0) target = $region13
  $region12: #{matrix_factorization_forward.1} parent=0 // pred_region
    _
  $region13: #{matrix_factorization_forward.1} parent=0 // pred_fallthru
    _
  %v14 = vld [vmem:[%s0] sm:$0xff]
  %v15 = vld [vmem:[%s0 + $0x8] sm:$0xff]
  %v16 = vld [vmem:[%s0 + $0x10] sm:$0xff]
  %v17 = vld [vmem:[%s0 + $0x18] sm:$0xff]
  %v18 = vld [vmem:[%s1] sm:$0xff]
  %v19 = vld [vmem:[%s1 + $0x8] sm:$0xff]
  %v20 = vld [vmem:[%s1 + $0x10] sm:$0xff]
  %v21 = vld [vmem:[%s1 + $0x18] sm:$0xff]
  %v22 = vld [vmem:[%s2] sm:$0xff]
  %v23 = vld [vmem:[%s2 + $0x8] sm:$0xff]
  %v24 = vld [vmem:[%s2 + $0x10] sm:$0xff]
  %v25 = vld [vmem:[%s2 + $0x18] sm:$0xff]
  %v26 = vsub.f32 %v18, %v22
  %v27 = vsub.f32 %v19, %v23
  %v28 = vsub.f32 %v20, %v24
  %v29 = vsub.f32 %v21, %v25
  %v30 = vmul.f32 %v14, %v26
  %v31 = vmul.f32 %v15, %v27
  %v32 = vmul.f32 %v16, %v28
  %v33 = vmul.f32 %v17, %v29
  %v34 = vadd.f32 %v30, %v31
  %v35 = vadd.f32 %v34, %v32
  %v36 = vadd.f32 %v35, %v33
  %v37 = vrot.slane %v36, 4
  %v38 = vadd.f32 %v36, %v37
  %v39 = vrot.slane %v38, 2
  %v40 = vadd.f32 %v38, %v39
  %v41 = vrot.slane %v40, 1
  %v42 = vadd.f32 %v40, %v41
  %v43 = vxor.u32 %v42, 2147483648
  %v44 = vmul.f32 %v43, 1.442695
  %v45 = vpow.pop %v44
  %v46 = vadd.f32 %v45, 1.0
  %v47 = vrcp.pop %v46
  %v48 = vmul.f32 1.0, %v47
  %49 = vst [vmem:[%s3] sm:$0x1] %v48
  // Predicated region
  $region14: #{matrix_factorization_forward.1} parent=0 // pred_check
    _
  $region15: #{matrix_factorization_forward.1} parent=0 // pred_check_branch
    %51 = sbr.rel (0) target = $region17
  $region16: #{matrix_factorization_forward.1} parent=0 // pred_region
    _
  $region17: #{matrix_factorization_forward.1} parent=0 // pred_fallthru
    _
  // Predicated region
  $region18: #{matrix_factorization_forward.1} parent=0 // pred_check
    _
  $region19: #{matrix_factorization_forward.1} parent=0 // pred_check_branch
    %53 = sbr.rel (0) target = $region21
  $region20: #{matrix_factorization_forward.1} parent=0 // pred_region
    _
  $region21: #{matrix_factorization_forward.1} parent=0 // pred_fallthru
    _

</llo_original>
